<compile_context>
chip_gen: v5e
topology: v5e:2x2
jax: 0.10.0
libtpu: 0.0.40
codegen_flags: <defaults>
</compile_context>

<pallas_src>
import jax
import jax.numpy as jnp
from jax.experimental import pallas as pl
from jax.experimental.pallas import tpu as pltpu


OC_PAD = 128                 # lane-dense output width (out_channels == 1 sliced off outside)
FEAT_VMEM_BUDGET = 32 << 20  # budget for the double-buffered feature tiles
VMEM_LIMIT_BYTES = 48 << 20  # > v5e/v6e 16/32 MiB defaults, < v7x 64 MiB physical


def deep_normal_head_kernel(feat_ref, w1s_ref, b1_ref, w2_ref, b2_ref, out_ref):
    """Fused: ReLU -> global avg pool -> Linear -> ReLU -> Linear(OC=1).

    feat_ref : (TB, HW, C)  f32  channels-last: C on the lane axis (lane-dense)
    w1s_ref  : (C, H1)      f32  hidden weight, pre-transposed, scaled by 1/HW
    b1_ref   : (1, H1)      f32
    w2_ref   : (1, H1)      f32  output weight row (natural (OC, H1) layout, OC == 1)
    b2_ref   : (1, 1)       f32
    out_ref  : (TB, OC_PAD) f32  lane-dense slab; channel 0 holds the result
    """
    # F.relu(features, inplace=True): elementwise, all 128 VPU lanes busy.
    f = jnp.maximum(feat_ref[...], 0.0)
    # F.adaptive_avg_pool2d((1,1)) + flatten: sublane-axis sum over HW; the
    # 1/(H*W) divisor is folded into w1s.  pooled stays lane-dense (TB, C) and
    # feeds the MXU with no relayout.
    pooled = jnp.sum(f, axis=1)
    # self.hidden(features); self.relu(hidden)
    hidden = jnp.dot(pooled, w1s_ref[...], preferred_element_type=jnp.float32)
    hidden = jnp.maximum(hidden + b1_ref[...], 0.0)  # (TB, H1)
    # self.linear(hidden) with out_channels == 1: VPU multiply + lane reduce
    # instead of a wasteful N=1 MXU pass.
    result = jnp.sum(hidden * w2_ref[...], axis=-1, keepdims=True) + b2_ref[...]  # (TB, 1)
    # Lane-dense (unmasked) store; the wrapper slices channel 0.
    out_ref[...] = jnp.broadcast_to(result, out_ref.shape)


def prepare_params(w1, b1, w2, b2, hw):
    """One-time parameter prep (amortized across forwards).

    w1: (H1, C) hidden Linear weight, b1: (H1,)
    w2: (OC, H1) output Linear weight (OC == 1), b2: (OC,)
    """
    inv_hw = jnp.float32(1.0 / float(hw))
    w1s = jnp.transpose(w1) * inv_hw      # (C, H1), pooling divisor folded in
    b1_2d = b1.reshape(1, -1)             # (1, H1)
    w2_row = w2.reshape(1, -1)            # (1, H1)
    b2_2d = b2.reshape(1, 1)              # (1, 1)
    return w1s, b1_2d, w2_row, b2_2d


def _choose_batch_tile(B, HW, C, itemsize=4):
    """Pick the batch tile from an explicit VMEM budget for the double-buffered
    feature tiles (no lane padding now that C is the minor axis)."""
    per_row = HW * C * itemsize                           # bytes per batch row
    tb = min(256, max(1, FEAT_VMEM_BUDGET // (2 * per_row)))
    if tb >= 8:
        tb = (tb // 8) * 8                                # sublane-friendly
    tb = min(tb, B)
    # Keep >= 2 "parallel" grid steps when the batch allows it so the batch axis
    # can be sharded across both TensorCores on 2-TC chips (v7x megacore).
    if B >= 16:
        half = ((pl.cdiv(B, 2) + 7) // 8) * 8
        tb = min(tb, max(8, half))
    return max(1, tb)


@jax.jit
def deep_normal_head(feat_bxc, w1s, b1_2d, w2_row, b2_2d):
    """feat_bxc: (B, H*W, C) feature map, channels last (lane axis)."""
    B, HW, C = feat_bxc.shape
    H1 = w1s.shape[1]

    TB = _choose_batch_tile(B, HW, C, feat_bxc.dtype.itemsize)
    grid = (pl.cdiv(B, TB),)

    cost = pl.CostEstimate(
        flops=2 * B * C * HW + 2 * B * C * H1 + 4 * B * H1,
        transcendentals=0,
        bytes_accessed=(B * HW * C + C * H1 + 2 * H1 + 1 + B * OC_PAD) * 4,
    )

    out_padded = pl.pallas_call(
        deep_normal_head_kernel,
        out_shape=jax.ShapeDtypeStruct((B, OC_PAD), jnp.float32),
        grid=grid,
        in_specs=[
            pl.BlockSpec((TB, HW, C), lambda i: (i, 0, 0)),   # streamed feature tile
            pl.BlockSpec((C, H1), lambda i: (0, 0)),          # weights stay VMEM-resident
            pl.BlockSpec((1, H1), lambda i: (0, 0)),
            pl.BlockSpec((1, H1), lambda i: (0, 0)),
            pl.BlockSpec((1, 1), lambda i: (0, 0)),
        ],
        out_specs=pl.BlockSpec((TB, OC_PAD), lambda i: (i, 0)),
        compiler_params=pltpu.CompilerParams(
            dimension_semantics=("parallel",),
            vmem_limit_bytes=VMEM_LIMIT_BYTES,
        ),
        cost_estimate=cost,
    )(feat_bxc, w1s, b1_2d, w2_row, b2_2d)

    return out_padded[:, :1]  # out_channels == 1


@jax.jit
def deep_normal_forward(features_nchw, w1s, b1_2d, w2_row, b2_2d):
    """PyTorch-layout entry point: features_nchw is (B, C, H, W) from the extractor.

    One explicit NCHW -> channels-last transpose (a single HBM round trip) is far
    cheaper than streaming HW on the lane axis (8x VMEM padding, lane-sparse VPU,
    pre-MXU relayout).  A TPU-native NHWC backbone should call deep_normal_head
    directly with features.reshape(B, H*W, C) and skip this transpose.
    """
    B, C, H, W = features_nchw.shape
    feat = jnp.transpose(features_nchw, (0, 2, 3, 1)).reshape(B, H * W, C)
    return deep_normal_head(feat, w1s, b1_2d, w2_row, b2_2d)


def reference_forward(features_nchw, w1, b1, w2, b2):
    f = jnp.maximum(features_nchw, 0.0)
    pooled = jnp.mean(f, axis=(2, 3))               # (B, C)
    hidden = jnp.maximum(pooled @ w1.T + b1, 0.0)   # (B, H1)
    return hidden @ w2.T + b2                       # (B, OC)


if __name__ == "__main__":
    key = jax.random.PRNGKey(0)
    k_feat, k_w1, k_b1, k_w2, k_b2 = jax.random.split(key, 5)

    # densenet121 feature map: 1024 channels; small spatial/batch for the test.
    B, C, H, W = 2, 1024, 4, 4
    n_hidden, out_channels = 256, 1

    features = jax.random.normal(k_feat, (B, C, H, W), dtype=jnp.float32)

    # Deterministic PyTorch-Linear-style init: U(-1/sqrt(fan_in), 1/sqrt(fan_in))
    lim1 = 1.0 / jnp.sqrt(jnp.float32(C))
    w1 = jax.random.uniform(k_w1, (n_hidden, C), jnp.float32, -lim1, lim1)
    b1 = jax.random.uniform(k_b1, (n_hidden,), jnp.float32, -lim1, lim1)
    lim2 = 1.0 / jnp.sqrt(jnp.float32(n_hidden))
    w2 = jax.random.uniform(k_w2, (out_channels, n_hidden), jnp.float32, -lim2, lim2)
    b2 = jax.random.uniform(k_b2, (out_channels,), jnp.float32, -lim2, lim2)

    # One-time parameter preparation (amortized over every forward call).
    w1s, b1_2d, w2_row, b2_2d = prepare_params(w1, b1, w2, b2, H * W)

    out = deep_normal_forward(features, w1s, b1_2d, w2_row, b2_2d)
    out = jax.block_until_ready(out)

    ref = reference_forward(features, w1, b1, w2, b2)
    assert out.shape == (B, out_channels), out.shape
    assert jnp.allclose(out, ref, atol=1e-4, rtol=1e-4), (out, ref)

    print("KERNEL_OK")
</pallas_src>

<mosaic_0001>
module attributes {stable_mosaic.version = 11 : i64} {
  func.func @deep_normal_head_kernel(%arg0: i32, %arg1: memref<2x16x1024xf32, #tpu.memory_space<vmem>>, %arg2: memref<1024x256xf32, #tpu.memory_space<vmem>>, %arg3: memref<1x256xf32, #tpu.memory_space<vmem>>, %arg4: memref<1x256xf32, #tpu.memory_space<vmem>>, %arg5: memref<1x1xf32, #tpu.memory_space<vmem>>, %arg6: memref<2x128xf32, #tpu.memory_space<vmem>>) attributes {dimension_semantics = [#tpu.dimension_semantics<parallel>], iteration_bounds = array<i64: 1>, scalar_prefetch = 0 : i64, scratch_operands = 0 : i64, tpu.core_type = #tpu.core_type<tc>, window_params = [{transform_indices = @transform_0, window_bounds = array<i64: 2, 16, 1024>}, {pipeline_mode = #tpu.pipeline_mode<synchronous>, transform_indices = @transform_1, window_bounds = array<i64: 1024, 256>}, {pipeline_mode = #tpu.pipeline_mode<synchronous>, transform_indices = @transform_2, window_bounds = array<i64: 1, 256>}, {pipeline_mode = #tpu.pipeline_mode<synchronous>, transform_indices = @transform_3, window_bounds = array<i64: 1, 256>}, {pipeline_mode = #tpu.pipeline_mode<synchronous>, transform_indices = @transform_4, window_bounds = array<i64: 1, 1>}, {transform_indices = @transform_5, window_bounds = array<i64: 2, 128>}]} {
    %c0 = arith.constant 0 : index
    %c0_0 = arith.constant 0 : index
    %c0_1 = arith.constant 0 : index
    %0 = vector.load %arg1[%c0, %c0_0, %c0_1] : memref<2x16x1024xf32, #tpu.memory_space<vmem>>, vector<2x16x1024xf32>
    %cst = arith.constant 0.000000e+00 : f32
    %1 = vector.broadcast %cst : f32 to vector<2x16x1024xf32>
    %2 = arith.maximumf %0, %1 : vector<2x16x1024xf32>
    %cst_2 = arith.constant dense<0.000000e+00> : vector<2x1024xf32>
    %3 = vector.multi_reduction <add>, %2, %cst_2 [1] : vector<2x16x1024xf32> to vector<2x1024xf32>
    %c0_3 = arith.constant 0 : index
    %c0_4 = arith.constant 0 : index
    %4 = vector.load %arg2[%c0_3, %c0_4] : memref<1024x256xf32, #tpu.memory_space<vmem>>, vector<1024x256xf32>
    %cst_5 = arith.constant dense<0.000000e+00> : vector<2x256xf32>
    %5 = tpu.matmul %3, %4, %cst_5 {dimension_numbers = #tpu.dot_dimension_numbers<[1], [0], [0], [1], [0, 0, 1, 1], [], []>} : vector<2x1024xf32>, vector<1024x256xf32>, vector<2x256xf32> -> vector<2x256xf32>
    %c0_6 = arith.constant 0 : index
    %c0_7 = arith.constant 0 : index
    %6 = vector.load %arg3[%c0_6, %c0_7] : memref<1x256xf32, #tpu.memory_space<vmem>>, vector<1x256xf32>
    %7 = vector.broadcast %6 : vector<1x256xf32> to vector<2x256xf32>
    %8 = arith.addf %5, %7 : vector<2x256xf32>
    %cst_8 = arith.constant 0.000000e+00 : f32
    %9 = vector.broadcast %cst_8 : f32 to vector<2x256xf32>
    %10 = arith.maximumf %8, %9 : vector<2x256xf32>
    %c0_9 = arith.constant 0 : index
    %c0_10 = arith.constant 0 : index
    %11 = vector.load %arg4[%c0_9, %c0_10] : memref<1x256xf32, #tpu.memory_space<vmem>>, vector<1x256xf32>
    %12 = vector.broadcast %11 : vector<1x256xf32> to vector<2x256xf32>
    %13 = arith.mulf %10, %12 : vector<2x256xf32>
    %cst_11 = arith.constant dense<0.000000e+00> : vector<2xf32>
    %14 = vector.multi_reduction <add>, %13, %cst_11 [1] : vector<2x256xf32> to vector<2xf32>
    %15 = vector.shape_cast %14 : vector<2xf32> to vector<2x1xf32>
    %c0_12 = arith.constant 0 : index
    %c0_13 = arith.constant 0 : index
    %16 = vector.load %arg5[%c0_12, %c0_13] : memref<1x1xf32, #tpu.memory_space<vmem>>, vector<1x1xf32>
    %17 = vector.broadcast %16 : vector<1x1xf32> to vector<2x1xf32>
    %18 = arith.addf %15, %17 : vector<2x1xf32>
    %19 = vector.shape_cast %18 : vector<2x1xf32> to vector<2x1xf32>
    %20 = vector.broadcast %19 : vector<2x1xf32> to vector<2x128xf32>
    %c0_14 = arith.constant 0 : index
    %c0_15 = arith.constant 0 : index
    %21 = vector.load %arg6[%c0_14, %c0_15] : memref<2x128xf32, #tpu.memory_space<vmem>>, vector<2x128xf32>
    tpu.vector_store %arg6[%c0_14, %c0_15], %20 {strides = array<i32>} : memref<2x128xf32, #tpu.memory_space<vmem>>, vector<2x128xf32>,
    return
  }
  func.func @transform_0(%arg0: i32) -> (i32, i32, i32) {
    %c0_i32 = arith.constant 0 : i32
    %c0_i32_0 = arith.constant 0 : i32
    %c0_i32_1 = arith.constant 0 : i32
    return %arg0, %c0_i32, %c0_i32_0 : i32, i32, i32
  }
  func.func @transform_1(%arg0: i32) -> (i32, i32) {
    %c0_i32 = arith.constant 0 : i32
    %c0_i32_0 = arith.constant 0 : i32
    %c0_i32_1 = arith.constant 0 : i32
    return %c0_i32, %c0_i32_0 : i32, i32
  }
  func.func @transform_2(%arg0: i32) -> (i32, i32) {
    %c0_i32 = arith.constant 0 : i32
    %c0_i32_0 = arith.constant 0 : i32
    %c0_i32_1 = arith.constant 0 : i32
    return %c0_i32, %c0_i32_0 : i32, i32
  }
  func.func @transform_3(%arg0: i32) -> (i32, i32) {
    %c0_i32 = arith.constant 0 : i32
    %c0_i32_0 = arith.constant 0 : i32
    %c0_i32_1 = arith.constant 0 : i32
    return %c0_i32, %c0_i32_0 : i32, i32
  }
  func.func @transform_4(%arg0: i32) -> (i32, i32) {
    %c0_i32 = arith.constant 0 : i32
    %c0_i32_0 = arith.constant 0 : i32
    %c0_i32_1 = arith.constant 0 : i32
    return %c0_i32, %c0_i32_0 : i32, i32
  }
  func.func @transform_5(%arg0: i32) -> (i32, i32) {
    %c0_i32 = arith.constant 0 : i32
    %c0_i32_0 = arith.constant 0 : i32
    return %arg0, %c0_i32 : i32, i32
  }
}

</mosaic_0001>

<llo_original>
// kernel: deep_normal_head.1
$region0: #{deep_normal_head.1}
  #allocation0 [shape = 'u32[]', space=smem, size = 0x4, offset = 0x4, fixed_abs, tag = 'smem constant byte address 0x4 - core index']
  #allocation1 [shape = 'u32[72,128]{1,0:T(1,128)}', space=vmem, size = 0x9000, scoped, tag = 'internal scratch']
  #allocation2 [shape = 'f32[1,1]{1,0:T(1,128)S(1)}', space=vmem, size = 0x200, scoped, tag = 'scoped memory for deep_normal_head.1']
  %s0 = inlined_call_operand.hbm [shape: f32[2,16,1024], index: 0, kind: input, shape index: {}]
  %s1 = inlined_call_operand.hbm [shape: f32[1024,256], index: 1, kind: input, shape index: {}]
  %s2 = inlined_call_operand.vmem [shape: f32[1,256], index: 2, kind: input, shape index: {}]
  %s3 = inlined_call_operand.vmem [shape: f32[1,256], index: 3, kind: input, shape index: {}]
  %s4 = inlined_call_operand.<no memory space> [shape: f32[1,1], index: 4, kind: input, shape index: {}]
  %s5 = inlined_call_operand.vmem [shape: f32[2,128], index: 5, kind: output, shape index: {}]
  %s6 = sld [smem:[#allocation0]]
  $region38: #{deep_normal_head.1} parent=0
    _
  %s8 = ssub.s32 1, %s6
  %s9 = scalar_select 0, %s8, %s6
  %v10 = vstv %s4
  %11 = vst [vmem:[#allocation2] sm:$0x1] %v10
  $region1: #{deep_normal_head.1} parent=0
    #allocation3 [shape = 'u8[131072]{0}', space=vmem, size = 0x20000, scoped, tag = 'input window, operand 0, single buffered']
    #allocation4 [shape = 's32[1]{0}', space=sflag, size = 0x4, scoped, tag = 'scoped memory for deep_normal_head.1']
    #allocation5 [shape = 'u8[1048576]{0}', space=vmem, size = 0x100000, scoped, tag = 'input window, operand 1, single buffered']
    #allocation6 [shape = 's32[1]{0}', space=sflag, size = 0x4, scoped, tag = 'scoped memory for deep_normal_head.1']
    %12 = vsyncpa [#allocation4], 0
    %13 = vsyncpa [#allocation6], 0
    // Predicated region
    $region2: #{deep_normal_head.1} parent=1 // pred_check
      _
    $region3: #{deep_normal_head.1} parent=1 // pred_check_branch
      %15 = sbr.rel (0) target = $region5
    $region4: #{deep_normal_head.1} parent=1 // pred_region
      %17 = vsyncadd [#allocation4], 0
      %s18 = sshll.u32 %s0, 4
      %s19 = int_to_ptr.hbm [resolvable:$true] %s18
      %s20 = sshll.u32 [#allocation3], 4
      %s21 = int_to_ptr.vmem [resolvable:$true] %s20
      %26 = dma.hbm_to_vmem [thread:$0]  %s19, 4096, %s21, [#allocation4], 1024, 1024, 64
    $region5: #{deep_normal_head.1} parent=1 // pred_fallthru
      _
    // Predicated region
    $region6: #{deep_normal_head.1} parent=1 // pred_check
      _
    $region7: #{deep_normal_head.1} parent=1 // pred_check_branch
      %28 = sbr.rel (0) target = $region9
    $region8: #{deep_normal_head.1} parent=1 // pred_region
      %30 = vsyncadd [#allocation6], 0
      %s31 = sshll.u32 %s1, 4
      %s32 = int_to_ptr.hbm [resolvable:$true] %s31
      %s33 = sshll.u32 [#allocation5], 4
      %s34 = int_to_ptr.vmem [resolvable:$true] %s33
      %39 = dma.hbm_to_vmem [thread:$0]  %s32, 32768, %s34, [#allocation6], 256, 256, 16
    $region9: #{deep_normal_head.1} parent=1 // pred_fallthru
      _
    // Predicated region
    $region10: #{deep_normal_head.1} parent=1 // pred_check
      _
    $region11: #{deep_normal_head.1} parent=1 // pred_check_branch
      %41 = sbr.rel (0) target = $region13
    $region12: #{deep_normal_head.1} parent=1 // pred_region
      _
    $region13: #{deep_normal_head.1} parent=1 // pred_fallthru
      _
    // Predicated region
    $region14: #{deep_normal_head.1} parent=1 // pred_check
      _
    $region15: #{deep_normal_head.1} parent=1 // pred_check_branch
      %43 = sbr.rel (0) target = $region17
    $region16: #{deep_normal_head.1} parent=1 // pred_region
      _
    $region17: #{deep_normal_head.1} parent=1 // pred_fallthru
      _
    // Predicated region
    $region18: #{deep_normal_head.1} parent=1 // pred_check
      _
    $region19: #{deep_normal_head.1} parent=1 // pred_check_branch
      %45 = sbr.rel (0) target = $region21
    $region20: #{deep_normal_head.1} parent=1 // pred_region
      _
    $region21: #{deep_normal_head.1} parent=1 // pred_fallthru
      _
    // Predicated region
    $region22: #{deep_normal_head.1} parent=1 // pred_check
      _
    $region23: #{deep_normal_head.1} parent=1 // pred_check_branch
      %47 = sbr.rel (0) target = $region25
    $region24: #{deep_normal_head.1} parent=1 // pred_region
      %49 = dma.done [#allocation4], 4096
    $region25: #{deep_normal_head.1} parent=1 // pred_fallthru
      _
    // Predicated region
    $region26: #{deep_normal_head.1} parent=1 // pred_check
      _
    $region27: #{deep_normal_head.1} parent=1 // pred_check_branch
      %51 = sbr.rel (0) target = $region29
    $region28: #{deep_normal_head.1} parent=1 // pred_region
      %53 = dma.done [#allocation6], 32768
    $region29: #{deep_normal_head.1} parent=1 // pred_fallthru
      _
    %v54 = vld [vmem:[#allocation3] sm:$0xff]
    %v55 = vld [vmem:[#allocation3 + $0x8] sm:$0xff]
    %v56 = vld [vmem:[#allocation3 + $0x10] sm:$0xff]
    %v57 = vld [vmem:[#allocation3 + $0x18] sm:$0xff]
    %v58 = vld [vmem:[#allocation3 + $0x20] sm:$0xff]
    %v59 = vld [vmem:[#allocation3 + $0x28] sm:$0xff]
    %v60 = vld [vmem:[#allocation3 + $0x30] sm:$0xff]
    %v61 = vld [vmem:[#allocation3 + $0x38] sm:$0xff]
    %v62 = vld [vmem:[#allocation3 + $0x40] sm:$0xff]
    %v63 = vld [vmem:[#allocation3 + $0x48] sm:$0xff]
    %v64 = vld [vmem:[#allocation3 + $0x50] sm:$0xff]
    %v65 = vld [vmem:[#allocation3 + $0x58] sm:$0xff]
    %v66 = vld [vmem:[#allocation3 + $0x60] sm:$0xff]
    %v67 = vld [vmem:[#allocation3 + $0x68] sm:$0xff]
    %v68 = vld [vmem:[#allocation3 + $0x70] sm:$0xff]
    %v69 = vld [vmem:[#allocation3 + $0x78] sm:$0xff]
    %v70 = vld [vmem:[#allocation3 + $0x80] sm:$0xff]
    %v71 = vld [vmem:[#allocation3 + $0x88] sm:$0xff]
    %v72 = vld [vmem:[#allocation3 + $0x90] sm:$0xff]
    %v73 = vld [vmem:[#allocation3 + $0x98] sm:$0xff]
    %v74 = vld [vmem:[#allocation3 + $0xa0] sm:$0xff]
    %v75 = vld [vmem:[#allocation3 + $0xa8] sm:$0xff]
    %v76 = vld [vmem:[#allocation3 + $0xb0] sm:$0xff]
    %v77 = vld [vmem:[#allocation3 + $0xb8] sm:$0xff]
    %v78 = vld [vmem:[#allocation3 + $0xc0] sm:$0xff]
    %v79 = vld [vmem:[#allocation3 + $0xc8] sm:$0xff]
    %v80 = vld [vmem:[#allocation3 + $0xd0] sm:$0xff]
    %v81 = vld [vmem:[#allocation3 + $0xd8] sm:$0xff]
    %v82 = vld [vmem:[#allocation3 + $0xe0] sm:$0xff]
    %v83 = vld [vmem:[#allocation3 + $0xe8] sm:$0xff]
    %v84 = vld [vmem:[#allocation3 + $0xf0] sm:$0xff]
    %v85 = vld [vmem:[#allocation3 + $0xf8] sm:$0xff]
    %v86 = vmax.f32 %v54, 0.0
    %v87 = vmax.f32 %v55, 0.0
    %v88 = vmax.f32 %v56, 0.0
    %v89 = vmax.f32 %v57, 0.0
    %v90 = vmax.f32 %v58, 0.0
    %v91 = vmax.f32 %v59, 0.0
    %v92 = vmax.f32 %v60, 0.0
    %v93 = vmax.f32 %v61, 0.0
    %v94 = vmax.f32 %v62, 0.0
    %v95 = vmax.f32 %v63, 0.0
    %v96 = vmax.f32 %v64, 0.0
    %v97 = vmax.f32 %v65, 0.0
    %v98 = vmax.f32 %v66, 0.0
    %v99 = vmax.f32 %v67, 0.0
    %v100 = vmax.f32 %v68, 0.0
    %v101 = vmax.f32 %v69, 0.0
    %v102 = vmax.f32 %v70, 0.0
    %v103 = vmax.f32 %v71, 0.0
    %v104 = vmax.f32 %v72, 0.0
    %v105 = vmax.f32 %v73, 0.0
    %v106 = vmax.f32 %v74, 0.0
    %v107 = vmax.f32 %v75, 0.0
    %v108 = vmax.f32 %v76, 0.0
    %v109 = vmax.f32 %v77, 0.0
    %v110 = vmax.f32 %v78, 0.0
    %v111 = vmax.f32 %v79, 0.0
    %v112 = vmax.f32 %v80, 0.0
    %v113 = vmax.f32 %v81, 0.0
    %v114 = vmax.f32 %v82, 0.0
    %v115 = vmax.f32 %v83, 0.0
    %v116 = vmax.f32 %v84, 0.0
    %v117 = vmax.f32 %v85, 0.0
    %v118 = vadd.f32 %v86, %v94
    %v119 = vrot.slane %v118, 4
    %v120 = vadd.f32 %v118, %v119
    %v121 = vrot.slane %v120, 2
    %v122 = vadd.f32 %v120, %v121
    %v123 = vrot.slane %v122, 1
    %v124 = vadd.f32 %v122, %v123
    %v125 = vadd.f32 %v87, %v95
    %v126 = vrot.slane %v125, 4
    %v127 = vadd.f32 %v125, %v126
    %v128 = vrot.slane %v127, 2
    %v129 = vadd.f32 %v127, %v128
    %v130 = vrot.slane %v129, 1
    %v131 = vadd.f32 %v129, %v130
    %v132 = vadd.f32 %v88, %v96
    %v133 = vrot.slane %v132, 4
    %v134 = vadd.f32 %v132, %v133
    %v135 = vrot.slane %v134, 2
    %v136 = vadd.f32 %v134, %v135
    %v137 = vrot.slane %v136, 1
    %v138 = vadd.f32 %v136, %v137
    %v139 = vadd.f32 %v89, %v97
    %v140 = vrot.slane %v139, 4
    %v141 = vadd.f32 %v139, %v140
    %v142 = vrot.slane %v141, 2
    %v143 = vadd.f32 %v141, %v142
    %v144 = vrot.slane %v143, 1
    %v145 = vadd.f32 %v143, %v144
    %v146 = vadd.f32 %v90, %v98
    %v147 = vrot.slane %v146, 4
    %v148 = vadd.f32 %v146, %v147
    %v149 = vrot.slane %v148, 2
    %v150 = vadd.f32 %v148, %v149
    %v151 = vrot.slane %v150, 1
    %v152 = vadd.f32 %v150, %v151
    %v153 = vadd.f32 %v91, %v99
    %v154 = vrot.slane %v153, 4
    %v155 = vadd.f32 %v153, %v154
    %v156 = vrot.slane %v155, 2
    %v157 = vadd.f32 %v155, %v156
    %v158 = vrot.slane %v157, 1
    %v159 = vadd.f32 %v157, %v158
    %v160 = vadd.f32 %v92, %v100
    %v161 = vrot.slane %v160, 4
    %v162 = vadd.f32 %v160, %v161
    %v163 = vrot.slane %v162, 2
    %v164 = vadd.f32 %v162, %v163
    %v165 = vrot.slane %v164, 1
    %v166 = vadd.f32 %v164, %v165
    %v167 = vadd.f32 %v93, %v101
    %v168 = vrot.slane %v167, 4
    %v169 = vadd.f32 %v167, %v168
    %v170 = vrot.slane %v169, 2
    %v171 = vadd.f32 %v169, %v170
    %v172 = vrot.slane %v171, 1
    %v173 = vadd.f32 %v171, %v172
    %v174 = vadd.f32 %v102, %v110
    %v175 = vrot.slane %v174, 4
    %v176 = vadd.f32 %v174, %v175
    %v177 = vrot.slane %v176, 2
    %v178 = vadd.f32 %v176, %v177
    %v179 = vrot.slane %v178, 1
    %v180 = vadd.f32 %v178, %v179
    %v181 = vadd.f32 %v103, %v111
    %v182 = vrot.slane %v181, 4
    %v183 = vadd.f32 %v181, %v182
    %v184 = vrot.slane %v183, 2
    %v185 = vadd.f32 %v183, %v184
    %v186 = vrot.slane %v185, 1
    %v187 = vadd.f32 %v185, %v186
    %v188 = vadd.f32 %v104, %v112
    %v189 = vrot.slane %v188, 4
    %v190 = vadd.f32 %v188, %v189
    %v191 = vrot.slane %v190, 2
    %v192 = vadd.f32 %v190, %v191
    %v193 = vrot.slane %v192, 1
    %v194 = vadd.f32 %v192, %v193
    %v195 = vadd.f32 %v105, %v113
    %v196 = vrot.slane %v195, 4
    %v197 = vadd.f32 %v195, %v196
    %v198 = vrot.slane %v197, 2
    %v199 = vadd.f32 %v197, %v198
    %v200 = vrot.slane %v199, 1
    %v201 = vadd.f32 %v199, %v200
    %v202 = vadd.f32 %v106, %v114
    %v203 = vrot.slane %v202, 4
    %v204 = vadd.f32 %v202, %v203
    %v205 = vrot.slane %v204, 2
    %v206 = vadd.f32 %v204, %v205
    %v207 = vrot.slane %v206, 1
    %v208 = vadd.f32 %v206, %v207
    %v209 = vadd.f32 %v107, %v115
    %v210 = vrot.slane %v209, 4
    %v211 = vadd.f32 %v209, %v210
    %v212 = vrot.slane %v211, 2
    %v213 = vadd.f32 %v211, %v212
    %v214 = vrot.slane %v213, 1
    %v215 = vadd.f32 %v213, %v214
    %v216 = vadd.f32 %v108, %v116
    %v217 = vrot.slane %v216, 4
    %v218 = vadd.f32 %v216, %v217
    %v219 = vrot.slane %v218, 2
    %v220 = vadd.f32 %v218, %v219
    %v221 = vrot.slane %v220, 1
    %v222 = vadd.f32 %v220, %v221
    %v223 = vadd.f32 %v109, %v117
    %v224 = vrot.slane %v223, 4
    %v225 = vadd.f32 %v223, %v224
    %v226 = vrot.slane %v225, 2
    %v227 = vadd.f32 %v225, %v226
    %v228 = vrot.slane %v227, 1
    %v229 = vadd.f32 %v227, %v228
    %v230 = vld [vmem:[#allocation5] sm:$0xff]
    %v231 = vld [vmem:[#allocation5 + $0x8] sm:$0xff]
    %v232 = vld [vmem:[#allocation5 + $0x10] sm:$0xff]
    %v233 = vld [vmem:[#allocation5 + $0x18] sm:$0xff]
    %v234 = vld [vmem:[#allocation5 + $0x20] sm:$0xff]
    %v235 = vld [vmem:[#allocation5 + $0x28] sm:$0xff]
    %v236 = vld [vmem:[#allocation5 + $0x30] sm:$0xff]
    %v237 = vld [vmem:[#allocation5 + $0x38] sm:$0xff]
    %v238 = vld [vmem:[#allocation5 + $0x40] sm:$0xff]
    %v239 = vld [vmem:[#allocation5 + $0x48] sm:$0xff]
    %v240 = vld [vmem:[#allocation5 + $0x50] sm:$0xff]
    %v241 = vld [vmem:[#allocation5 + $0x58] sm:$0xff]
    %v242 = vld [vmem:[#allocation5 + $0x60] sm:$0xff]
    %v243 = vld [vmem:[#allocation5 + $0x68] sm:$0xff]
    %v244 = vld [vmem:[#allocation5 + $0x70] sm:$0xff]
    %v245 = vld [vmem:[#allocation5 + $0x78] sm:$0xff]
    %v246 = vld [vmem:[#allocation5 + $0x80] sm:$0xff]
    %v247 = vld [vmem:[#allocation5 + $0x88] sm:$0xff]
    %v248 = vld [vmem:[#allocation5 + $0x90] sm:$0xff]
    %v249 = vld [vmem:[#allocation5 + $0x98] sm:$0xff]
    %v250 = vld [vmem:[#allocation5 + $0xa0] sm:$0xff]
    %v251 = vld [vmem:[#allocation5 + $0xa8] sm:$0xff]
    %v252 = vld [vmem:[#allocation5 + $0xb0] sm:$0xff]
    %v253 = vld [vmem:[#allocation5 + $0xb8] sm:$0xff]
    %v254 = vld [vmem:[#allocation5 + $0xc0] sm:$0xff]
    %v255 = vld [vmem:[#allocation5 + $0xc8] sm:$0xff]
    %v256 = vld [vmem:[#allocation5 + $0xd0] sm:$0xff]
    %v257 = vld [vmem:[#allocation5 + $0xd8] sm:$0xff]
    %v258 = vld [vmem:[#allocation5 + $0xe0] sm:$0xff]
    %v259 = vld [vmem:[#allocation5 + $0xe8] sm:$0xff]
    %v260 = vld [vmem:[#allocation5 + $0xf0] sm:$0xff]
    %v261 = vld [vmem:[#allocation5 + $0xf8] sm:$0xff]
    %v262 = vld [vmem:[#allocation5 + $0x100] sm:$0xff]
    %v263 = vld [vmem:[#allocation5 + $0x108] sm:$0xff]
    %v264 = vld [vmem:[#allocation5 + $0x110] sm:$0xff]
    %v265 = vld [vmem:[#allocation5 + $0x118] sm:$0xff]
    %v266 = vld [vmem:[#allocation5 + $0x120] sm:$0xff]
    %v267 = vld [vmem:[#allocation5 + $0x128] sm:$0xff]
    %v268 = vld [vmem:[#allocation5 + $0x130] sm:$0xff]
    %v269 = vld [vmem:[#allocation5 + $0x138] sm:$0xff]
    %v270 = vld [vmem:[#allocation5 + $0x140] sm:$0xff]
    %v271 = vld [vmem:[#allocation5 + $0x148] sm:$0xff]
    %v272 = vld [vmem:[#allocation5 + $0x150] sm:$0xff]
    %v273 = vld [vmem:[#allocation5 + $0x158] sm:$0xff]
    %v274 = vld [vmem:[#allocation5 + $0x160] sm:$0xff]
    %v275 = vld [vmem:[#allocation5 + $0x168] sm:$0xff]
    %v276 = vld [vmem:[#allocation5 + $0x170] sm:$0xff]
    %v277 = vld [vmem:[#allocation5 + $0x178] sm:$0xff]
    %v278 = vld [vmem:[#allocation5 + $0x180] sm:$0xff]
    %v279 = vld [vmem:[#allocation5 + $0x188] sm:$0xff]
    %v280 = vld [vmem:[#allocation5 + $0x190] sm:$0xff]
    %v281 = vld [vmem:[#allocation5 + $0x198] sm:$0xff]
    %v282 = vld [vmem:[#allocation5 + $0x1a0] sm:$0xff]
    %v283 = vld [vmem:[#allocation5 + $0x1a8] sm:$0xff]
    %v284 = vld [vmem:[#allocation5 + $0x1b0] sm:$0xff]
    %v285 = vld [vmem:[#allocation5 + $0x1b8] sm:$0xff]
    %v286 = vld [vmem:[#allocation5 + $0x1c0] sm:$0xff]
    %v287 = vld [vmem:[#allocation5 + $0x1c8] sm:$0xff]
    %v288 = vld [vmem:[#allocation5 + $0x1d0] sm:$0xff]
    %v289 = vld [vmem:[#allocation5 + $0x1d8] sm:$0xff]
    %v290 = vld [vmem:[#allocation5 + $0x1e0] sm:$0xff]
    %v291 = vld [vmem:[#allocation5 + $0x1e8] sm:$0xff]
    %v292 = vld [vmem:[#allocation5 + $0x1f0] sm:$0xff]
    %v293 = vld [vmem:[#allocation5 + $0x1f8] sm:$0xff]
    %v294 = vld [vmem:[#allocation5 + $0x200] sm:$0xff]
    %v295 = vld [vmem:[#allocation5 + $0x208] sm:$0xff]
    %v296 = vld [vmem:[#allocation5 + $0x210] sm:$0xff]
    %v297 = vld [vmem:[#allocation5 + $0x218] sm:$0xff]
    %v298 = vld [vmem:[#allocation5 + $0x220] sm:$0xff]
    %v299 = vld [vmem:[#allocation5 + $0x228] sm:$0xff]
    %v300 = vld [vmem:[#allocation5 + $0x230] sm:$0xff]
    %v301 = vld [vmem:[#allocation5 + $0x238] sm:$0xff]
    %v302 = vld [vmem:[#allocation5 + $0x240] sm:$0xff]
    %v303 = vld [vmem:[#allocation5 + $0x248] sm:$0xff]
    %v304 = vld [vmem:[#allocation5 + $0x250] sm:$0xff]
    %v305 = vld [vmem:[#allocation5 + $0x258] sm:$0xff]
    %v306 = vld [vmem:[#allocation5 + $0x260] sm:$0xff]
    %v307 = vld [vmem:[#allocation5 + $0x268] sm:$0xff]
    %v308 = vld [vmem:[#allocation5 + $0x270] sm:$0xff]
    %v309 = vld [vmem:[#allocation5 + $0x278] sm:$0xff]
    %v310 = vld [vmem:[#allocation5 + $0x280] sm:$0xff]
    %v311 = vld [vmem:[#allocation5 + $0x288] sm:$0xff]
    %v312 = vld [vmem:[#allocation5 + $0x290] sm:$0xff]
    %v313 = vld [vmem:[#allocation5 + $0x298] sm:$0xff]
    %v314 = vld [vmem:[#allocation5 + $0x2a0] sm:$0xff]
    %v315 = vld [vmem:[#allocation5 + $0x2a8] sm:$0xff]
    %v316 = vld [vmem:[#allocation5 + $0x2b0] sm:$0xff]
    %v317 = vld [vmem:[#allocation5 + $0x2b8] sm:$0xff]
    %v318 = vld [vmem:[#allocation5 + $0x2c0] sm:$0xff]
    %v319 = vld [vmem:[#allocation5 + $0x2c8] sm:$0xff]
    %v320 = vld [vmem:[#allocation5 + $0x2d0] sm:$0xff]
    %v321 = vld [vmem:[#allocation5 + $0x2d8] sm:$0xff]
    %v322 = vld [vmem:[#allocation5 + $0x2e0] sm:$0xff]
    %v323 = vld [vmem:[#allocation5 + $0x2e8] sm:$0xff]
    %v324 = vld [vmem:[#allocation5 + $0x2f0] sm:$0xff]
    %v325 = vld [vmem:[#allocation5 + $0x2f8] sm:$0xff]
    %v326 = vld [vmem:[#allocation5 + $0x300] sm:$0xff]
    %v327 = vld [vmem:[#allocation5 + $0x308] sm:$0xff]
    %v328 = vld [vmem:[#allocation5 + $0x310] sm:$0xff]
    %v329 = vld [vmem:[#allocation5 + $0x318] sm:$0xff]
    %v330 = vld [vmem:[#allocation5 + $0x320] sm:$0xff]
    %v331 = vld [vmem:[#allocation5 + $0x328] sm:$0xff]
    %v332 = vld [vmem:[#allocation5 + $0x330] sm:$0xff]
    %v333 = vld [vmem:[#allocation5 + $0x338] sm:$0xff]
    %v334 = vld [vmem:[#allocation5 + $0x340] sm:$0xff]
    %v335 = vld [vmem:[#allocation5 + $0x348] sm:$0xff]
    %v336 = vld [vmem:[#allocation5 + $0x350] sm:$0xff]
    %v337 = vld [vmem:[#allocation5 + $0x358] sm:$0xff]
    %v338 = vld [vmem:[#allocation5 + $0x360] sm:$0xff]
    %v339 = vld [vmem:[#allocation5 + $0x368] sm:$0xff]
    %v340 = vld [vmem:[#allocation5 + $0x370] sm:$0xff]
    %v341 = vld [vmem:[#allocation5 + $0x378] sm:$0xff]
    %v342 = vld [vmem:[#allocation5 + $0x380] sm:$0xff]
    %v343 = vld [vmem:[#allocation5 + $0x388] sm:$0xff]
    %v344 = vld [vmem:[#allocation5 + $0x390] sm:$0xff]
    %v345 = vld [vmem:[#allocation5 + $0x398] sm:$0xff]
    %v346 = vld [vmem:[#allocation5 + $0x3a0] sm:$0xff]
    %v347 = vld [vmem:[#allocation5 + $0x3a8] sm:$0xff]
    %v348 = vld [vmem:[#allocation5 + $0x3b0] sm:$0xff]
    %v349 = vld [vmem:[#allocation5 + $0x3b8] sm:$0xff]
    %v350 = vld [vmem:[#allocation5 + $0x3c0] sm:$0xff]
    %v351 = vld [vmem:[#allocation5 + $0x3c8] sm:$0xff]
    %v352 = vld [vmem:[#allocation5 + $0x3d0] sm:$0xff]
    %v353 = vld [vmem:[#allocation5 + $0x3d8] sm:$0xff]
    %v354 = vld [vmem:[#allocation5 + $0x3e0] sm:$0xff]
    %v355 = vld [vmem:[#allocation5 + $0x3e8] sm:$0xff]
    %v356 = vld [vmem:[#allocation5 + $0x3f0] sm:$0xff]
    %v357 = vld [vmem:[#allocation5 + $0x3f8] sm:$0xff]
    %v358 = vld [vmem:[#allocation5 + $0x400] sm:$0xff]
    %v359 = vld [vmem:[#allocation5 + $0x408] sm:$0xff]
    %v360 = vld [vmem:[#allocation5 + $0x410] sm:$0xff]
    %v361 = vld [vmem:[#allocation5 + $0x418] sm:$0xff]
    %v362 = vld [vmem:[#allocation5 + $0x420] sm:$0xff]
    %v363 = vld [vmem:[#allocation5 + $0x428] sm:$0xff]
    %v364 = vld [vmem:[#allocation5 + $0x430] sm:$0xff]
    %v365 = vld [vmem:[#allocation5 + $0x438] sm:$0xff]
    %v366 = vld [vmem:[#allocation5 + $0x440] sm:$0xff]
    %v367 = vld [vmem:[#allocation5 + $0x448] sm:$0xff]
    %v368 = vld [vmem:[#allocation5 + $0x450] sm:$0xff]
    %v369 = vld [vmem:[#allocation5 + $0x458] sm:$0xff]
    %v370 = vld [vmem:[#allocation5 + $0x460] sm:$0xff]
    %v371 = vld [vmem:[#allocation5 + $0x468] sm:$0xff]
    %v372 = vld [vmem:[#allocation5 + $0x470] sm:$0xff]
    %v373 = vld [vmem:[#allocation5 + $0x478] sm:$0xff]
    %v374 = vld [vmem:[#allocation5 + $0x480] sm:$0xff]
    %v375 = vld [vmem:[#allocation5 + $0x488] sm:$0xff]
    %v376 = vld [vmem:[#allocation5 + $0x490] sm:$0xff]
    %v377 = vld [vmem:[#allocation5 + $0x498] sm:$0xff]
    %v378 = vld [vmem:[#allocation5 + $0x4a0] sm:$0xff]
    %v379 = vld [vmem:[#allocation5 + $0x4a8] sm:$0xff]
    %v380 = vld [vmem:[#allocation5 + $0x4b0] sm:$0xff]
    %v381 = vld [vmem:[#allocation5 + $0x4b8] sm:$0xff]
    %v382 = vld [vmem:[#allocation5 + $0x4c0] sm:$0xff]
    %v383 = vld [vmem:[#allocation5 + $0x4c8] sm:$0xff]
    %v384 = vld [vmem:[#allocation5 + $0x4d0] sm:$0xff]
    %v385 = vld [vmem:[#allocation5 + $0x4d8] sm:$0xff]
    %v386 = vld [vmem:[#allocation5 + $0x4e0] sm:$0xff]
    %v387 = vld [vmem:[#allocation5 + $0x4e8] sm:$0xff]
    %v388 = vld [vmem:[#allocation5 + $0x4f0] sm:$0xff]
    %v389 = vld [vmem:[#allocation5 + $0x4f8] sm:$0xff]
    %v390 = vld [vmem:[#allocation5 + $0x500] sm:$0xff]
    %v391 = vld [vmem:[#allocation5 + $0x508] sm:$0xff]
    %v392 = vld [vmem:[#allocation5 + $0x510] sm:$0xff]
    %v393 = vld [vmem:[#allocation5 + $0x518] sm:$0xff]
    %v394 = vld [vmem:[#allocation5 + $0x520] sm:$0xff]
    %v395 = vld [vmem:[#allocation5 + $0x528] sm:$0xff]
    %v396 = vld [vmem:[#allocation5 + $0x530] sm:$0xff]
    %v397 = vld [vmem:[#allocation5 + $0x538] sm:$0xff]
    %v398 = vld [vmem:[#allocation5 + $0x540] sm:$0xff]
    %v399 = vld [vmem:[#allocation5 + $0x548] sm:$0xff]
    %v400 = vld [vmem:[#allocation5 + $0x550] sm:$0xff]
    %v401 = vld [vmem:[#allocation5 + $0x558] sm:$0xff]
    %v402 = vld [vmem:[#allocation5 + $0x560] sm:$0xff]
    %v403 = vld [vmem:[#allocation5 + $0x568] sm:$0xff]
    %v404 = vld [vmem:[#allocation5 + $0x570] sm:$0xff]
    %v405 = vld [vmem:[#allocation5 + $0x578] sm:$0xff]
    %v406 = vld [vmem:[#allocation5 + $0x580] sm:$0xff]
    %v407 = vld [vmem:[#allocation5 + $0x588] sm:$0xff]
    %v408 = vld [vmem:[#allocation5 + $0x590] sm:$0xff]
    %v409 = vld [vmem:[#allocation5 + $0x598] sm:$0xff]
    %v410 = vld [vmem:[#allocation5 + $0x5a0] sm:$0xff]
    %v411 = vld [vmem:[#allocation5 + $0x5a8] sm:$0xff]
    %v412 = vld [vmem:[#allocation5 + $0x5b0] sm:$0xff]
    %v413 = vld [vmem:[#allocation5 + $0x5b8] sm:$0xff]
    %v414 = vld [vmem:[#allocation5 + $0x5c0] sm:$0xff]
    %v415 = vld [vmem:[#allocation5 + $0x5c8] sm:$0xff]
    %v416 = vld [vmem:[#allocation5 + $0x5d0] sm:$0xff]
    %v417 = vld [vmem:[#allocation5 + $0x5d8] sm:$0xff]
    %v418 = vld [vmem:[#allocation5 + $0x5e0] sm:$0xff]
    %v419 = vld [vmem:[#allocation5 + $0x5e8] sm:$0xff]
    %v420 = vld [vmem:[#allocation5 + $0x5f0] sm:$0xff]
    %v421 = vld [vmem:[#allocation5 + $0x5f8] sm:$0xff]
    %v422 = vld [vmem:[#allocation5 + $0x600] sm:$0xff]
    %v423 = vld [vmem:[#allocation5 + $0x608] sm:$0xff]
    %v424 = vld [vmem:[#allocation5 + $0x610] sm:$0xff]
    %v425 = vld [vmem:[#allocation5 + $0x618] sm:$0xff]
    %v426 = vld [vmem:[#allocation5 + $0x620] sm:$0xff]
    %v427 = vld [vmem:[#allocation5 + $0x628] sm:$0xff]
    %v428 = vld [vmem:[#allocation5 + $0x630] sm:$0xff]
    %v429 = vld [vmem:[#allocation5 + $0x638] sm:$0xff]
    %v430 = vld [vmem:[#allocation5 + $0x640] sm:$0xff]
    %v431 = vld [vmem:[#allocation5 + $0x648] sm:$0xff]
    %v432 = vld [vmem:[#allocation5 + $0x650] sm:$0xff]
    %v433 = vld [vmem:[#allocation5 + $0x658] sm:$0xff]
    %v434 = vld [vmem:[#allocation5 + $0x660] sm:$0xff]
    %v435 = vld [vmem:[#allocation5 + $0x668] sm:$0xff]
    %v436 = vld [vmem:[#allocation5 + $0x670] sm:$0xff]
    %v437 = vld [vmem:[#allocation5 + $0x678] sm:$0xff]
    %v438 = vld [vmem:[#allocation5 + $0x680] sm:$0xff]
    %v439 = vld [vmem:[#allocation5 + $0x688] sm:$0xff]
    %v440 = vld [vmem:[#allocation5 + $0x690] sm:$0xff]
    %v441 = vld [vmem:[#allocation5 + $0x698] sm:$0xff]
    %v442 = vld [vmem:[#allocation5 + $0x6a0] sm:$0xff]
    %v443 = vld [vmem:[#allocation5 + $0x6a8] sm:$0xff]
    %v444 = vld [vmem:[#allocation5 + $0x6b0] sm:$0xff]
    %v445 = vld [vmem:[#allocation5 + $0x6b8] sm:$0xff]
    %v446 = vld [vmem:[#allocation5 + $0x6c0] sm:$0xff]
    %v447 = vld [vmem:[#allocation5 + $0x6c8] sm:$0xff]
    %v448 = vld [vmem:[#allocation5 + $0x6d0] sm:$0xff]
    %v449 = vld [vmem:[#allocation5 + $0x6d8] sm:$0xff]
    %v450 = vld [vmem:[#allocation5 + $0x6e0] sm:$0xff]
    %v451 = vld [vmem:[#allocation5 + $0x6e8] sm:$0xff]
    %v452 = vld [vmem:[#allocation5 + $0x6f0] sm:$0xff]
    %v453 = vld [vmem:[#allocation5 + $0x6f8] sm:$0xff]
    %v454 = vld [vmem:[#allocation5 + $0x700] sm:$0xff]
    %v455 = vld [vmem:[#allocation5 + $0x708] sm:$0xff]
    %v456 = vld [vmem:[#allocation5 + $0x710] sm:$0xff]
    %v457 = vld [vmem:[#allocation5 + $0x718] sm:$0xff]
    %v458 = vld [vmem:[#allocation5 + $0x720] sm:$0xff]
    %v459 = vld [vmem:[#allocation5 + $0x728] sm:$0xff]
    %v460 = vld [vmem:[#allocation5 + $0x730] sm:$0xff]
    %v461 = vld [vmem:[#allocation5 + $0x738] sm:$0xff]
    %v462 = vld [vmem:[#allocation5 + $0x740] sm:$0xff]
    %v463 = vld [vmem:[#allocation5 + $0x748] sm:$0xff]
    %v464 = vld [vmem:[#allocation5 + $0x750] sm:$0xff]
    %v465 = vld [vmem:[#allocation5 + $0x758] sm:$0xff]
    %v466 = vld [vmem:[#allocation5 + $0x760] sm:$0xff]
    %v467 = vld [vmem:[#allocation5 + $0x768] sm:$0xff]
    %v468 = vld [vmem:[#allocation5 + $0x770] sm:$0xff]
    %v469 = vld [vmem:[#allocation5 + $0x778] sm:$0xff]
    %v470 = vld [vmem:[#allocation5 + $0x780] sm:$0xff]
    %v471 = vld [vmem:[#allocation5 + $0x788] sm:$0xff]
    %v472 = vld [vmem:[#allocation5 + $0x790] sm:$0xff]
    %v473 = vld [vmem:[#allocation5 + $0x798] sm:$0xff]
    %v474 = vld [vmem:[#allocation5 + $0x7a0] sm:$0xff]
    %v475 = vld [vmem:[#allocation5 + $0x7a8] sm:$0xff]
    %v476 = vld [vmem:[#allocation5 + $0x7b0] sm:$0xff]
    %v477 = vld [vmem:[#allocation5 + $0x7b8] sm:$0xff]
    %v478 = vld [vmem:[#allocation5 + $0x7c0] sm:$0xff]
    %v479 = vld [vmem:[#allocation5 + $0x7c8] sm:$0xff]
    %v480 = vld [vmem:[#allocation5 + $0x7d0] sm:$0xff]
    %v481 = vld [vmem:[#allocation5 + $0x7d8] sm:$0xff]
    %v482 = vld [vmem:[#allocation5 + $0x7e0] sm:$0xff]
    %v483 = vld [vmem:[#allocation5 + $0x7e8] sm:$0xff]
    %v484 = vld [vmem:[#allocation5 + $0x7f0] sm:$0xff]
    %v485 = vld [vmem:[#allocation5 + $0x7f8] sm:$0xff]
    %v486 = vld [vmem:[%s2] sm:$0x3]
    %v488 = vperm.slane %v486, 0
    %v489 = vperm.slane %v486, 1
    %vm508 = vcmask 1041409
    %v509 = vsel %vm508, %v180, %v124
    %v510 = vsel %vm508, %v187, %v131
    %v511 = vsel %vm508, %v194, %v138
    %v512 = vsel %vm508, %v201, %v145
    %v513 = vsel %vm508, %v208, %v152
    %v514 = vsel %vm508, %v215, %v159
    %v515 = vsel %vm508, %v222, %v166
    %v516 = vsel %vm508, %v229, %v173
    %525 = vmatpush.msra.mxu0 %v260
    %526 = vmatpush.msra.mxu0 %v258
    %527 = vmatpush.msra.mxu0 %v256
    %528 = vmatpush.msra.mxu0 %v254
    %529 = vmatpush.msra.mxu0 %v252
    %530 = vmatpush.msra.mxu0 %v250
    %531 = vmatpush.msra.mxu0 %v248
    %532 = vmatpush.msra.mxu0 %v246
    %533 = vmatpush.msra.mxu0 %v244
    %534 = vmatpush.msra.mxu0 %v242
    %535 = vmatpush.msra.mxu0 %v240
    %536 = vmatpush.msra.mxu0 %v238
    %537 = vmatpush.msra.mxu0 %v236
    %538 = vmatpush.msra.mxu0 %v234
    %539 = vmatpush.msra.mxu0 %v232
    %540 = vmatpush.msra.mxu0 %v230
    %541 = vmatmul.f32.gmra.mxu0 %v509
    %v542 = vpop.f32.mrf.mxu0
    %v543 = vadd.f32 %v488, %v542
    %544 = vdwg.mxu0
    %545 = vmatpush.msra.mxu0 %v292
    %546 = vmatpush.msra.mxu0 %v290
    %547 = vmatpush.msra.mxu0 %v288
    %548 = vmatpush.msra.mxu0 %v286
    %549 = vmatpush.msra.mxu0 %v284
    %550 = vmatpush.msra.mxu0 %v282
    %551 = vmatpush.msra.mxu0 %v280
    %552 = vmatpush.msra.mxu0 %v278
    %553 = vmatpush.msra.mxu0 %v276
    %554 = vmatpush.msra.mxu0 %v274
    %555 = vmatpush.msra.mxu0 %v272
    %556 = vmatpush.msra.mxu0 %v270
    %557 = vmatpush.msra.mxu0 %v268
    %558 = vmatpush.msra.mxu0 %v266
    %559 = vmatpush.msra.mxu0 %v264
    %560 = vmatpush.msra.mxu0 %v262
    %561 = vmatmul.f32.gmra.mxu0 %v510
    %v562 = vpop.f32.mrf.mxu0
    %v563 = vadd.f32 %v543, %v562
    %564 = vdwg.mxu0
    %565 = vmatpush.msra.mxu0 %v324
    %566 = vmatpush.msra.mxu0 %v322
    %567 = vmatpush.msra.mxu0 %v320
    %568 = vmatpush.msra.mxu0 %v318
    %569 = vmatpush.msra.mxu0 %v316
    %570 = vmatpush.msra.mxu0 %v314
    %571 = vmatpush.msra.mxu0 %v312
    %572 = vmatpush.msra.mxu0 %v310
    %573 = vmatpush.msra.mxu0 %v308
    %574 = vmatpush.msra.mxu0 %v306
    %575 = vmatpush.msra.mxu0 %v304
    %576 = vmatpush.msra.mxu0 %v302
    %577 = vmatpush.msra.mxu0 %v300
    %578 = vmatpush.msra.mxu0 %v298
    %579 = vmatpush.msra.mxu0 %v296
    %580 = vmatpush.msra.mxu0 %v294
    %581 = vmatmul.f32.gmra.mxu0 %v511
    %v582 = vpop.f32.mrf.mxu0
    %v583 = vadd.f32 %v563, %v582
    %584 = vdwg.mxu0
    %585 = vmatpush.msra.mxu0 %v356
    %586 = vmatpush.msra.mxu0 %v354
    %587 = vmatpush.msra.mxu0 %v352
    %588 = vmatpush.msra.mxu0 %v350
    %589 = vmatpush.msra.mxu0 %v348
    %590 = vmatpush.msra.mxu0 %v346
    %591 = vmatpush.msra.mxu0 %v344
    %592 = vmatpush.msra.mxu0 %v342
    %593 = vmatpush.msra.mxu0 %v340
    %594 = vmatpush.msra.mxu0 %v338
    %595 = vmatpush.msra.mxu0 %v336
    %596 = vmatpush.msra.mxu0 %v334
    %597 = vmatpush.msra.mxu0 %v332
    %598 = vmatpush.msra.mxu0 %v330
    %599 = vmatpush.msra.mxu0 %v328
    %600 = vmatpush.msra.mxu0 %v326
    %601 = vmatmul.f32.gmra.mxu0 %v512
    %v602 = vpop.f32.mrf.mxu0
    %v603 = vadd.f32 %v583, %v602
    %604 = vdwg.mxu0
    %605 = vmatpush.msra.mxu0 %v388
    %606 = vmatpush.msra.mxu0 %v386
    %607 = vmatpush.msra.mxu0 %v384
    %608 = vmatpush.msra.mxu0 %v382
    %609 = vmatpush.msra.mxu0 %v380
    %610 = vmatpush.msra.mxu0 %v378
    %611 = vmatpush.msra.mxu0 %v376
    %612 = vmatpush.msra.mxu0 %v374
    %613 = vmatpush.msra.mxu0 %v372
    %614 = vmatpush.msra.mxu0 %v370
    %615 = vmatpush.msra.mxu0 %v368
    %616 = vmatpush.msra.mxu0 %v366
    %617 = vmatpush.msra.mxu0 %v364
    %618 = vmatpush.msra.mxu0 %v362
    %619 = vmatpush.msra.mxu0 %v360
    %620 = vmatpush.msra.mxu0 %v358
    %621 = vmatmul.f32.gmra.mxu0 %v513
    %v622 = vpop.f32.mrf.mxu0
    %v623 = vadd.f32 %v603, %v622
    %624 = vdwg.mxu0
    %625 = vmatpush.msra.mxu0 %v420
    %626 = vmatpush.msra.mxu0 %v418
    %627 = vmatpush.msra.mxu0 %v416
    %628 = vmatpush.msra.mxu0 %v414
    %629 = vmatpush.msra.mxu0 %v412
    %630 = vmatpush.msra.mxu0 %v410
    %631 = vmatpush.msra.mxu0 %v408
    %632 = vmatpush.msra.mxu0 %v406
    %633 = vmatpush.msra.mxu0 %v404
    %634 = vmatpush.msra.mxu0 %v402
    %635 = vmatpush.msra.mxu0 %v400
    %636 = vmatpush.msra.mxu0 %v398
    %637 = vmatpush.msra.mxu0 %v396
    %638 = vmatpush.msra.mxu0 %v394
    %639 = vmatpush.msra.mxu0 %v392
    %640 = vmatpush.msra.mxu0 %v390
    %641 = vmatmul.f32.gmra.mxu0 %v514
    %v642 = vpop.f32.mrf.mxu0
    %v643 = vadd.f32 %v623, %v642
    %644 = vdwg.mxu0
    %645 = vmatpush.msra.mxu0 %v452
    %646 = vmatpush.msra.mxu0 %v450
    %647 = vmatpush.msra.mxu0 %v448
    %648 = vmatpush.msra.mxu0 %v446
    %649 = vmatpush.msra.mxu0 %v444
    %650 = vmatpush.msra.mxu0 %v442
    %651 = vmatpush.msra.mxu0 %v440
    %652 = vmatpush.msra.mxu0 %v438
    %653 = vmatpush.msra.mxu0 %v436
    %654 = vmatpush.msra.mxu0 %v434
    %655 = vmatpush.msra.mxu0 %v432
    %656 = vmatpush.msra.mxu0 %v430
    %657 = vmatpush.msra.mxu0 %v428
    %658 = vmatpush.msra.mxu0 %v426
    %659 = vmatpush.msra.mxu0 %v424
    %660 = vmatpush.msra.mxu0 %v422
    %661 = vmatmul.f32.gmra.mxu0 %v515
    %v662 = vpop.f32.mrf.mxu0
    %v663 = vadd.f32 %v643, %v662
    %664 = vdwg.mxu0
    %665 = vmatpush.msra.mxu0 %v484
    %666 = vmatpush.msra.mxu0 %v482
    %667 = vmatpush.msra.mxu0 %v480
    %668 = vmatpush.msra.mxu0 %v478
    %669 = vmatpush.msra.mxu0 %v476
    %670 = vmatpush.msra.mxu0 %v474
    %671 = vmatpush.msra.mxu0 %v472
    %672 = vmatpush.msra.mxu0 %v470
    %673 = vmatpush.msra.mxu0 %v468
    %674 = vmatpush.msra.mxu0 %v466
    %675 = vmatpush.msra.mxu0 %v464
    %676 = vmatpush.msra.mxu0 %v462
    %677 = vmatpush.msra.mxu0 %v460
    %678 = vmatpush.msra.mxu0 %v458
    %679 = vmatpush.msra.mxu0 %v456
    %680 = vmatpush.msra.mxu0 %v454
    %681 = vmatmul.f32.gmra.mxu0 %v516
    %v682 = vpop.f32.mrf.mxu0
    %v683 = vadd.f32 %v663, %v682
    %684 = vdwg.mxu0
    %685 = vmatpush.msra.mxu0 %v261
    %686 = vmatpush.msra.mxu0 %v259
    %687 = vmatpush.msra.mxu0 %v257
    %688 = vmatpush.msra.mxu0 %v255
    %689 = vmatpush.msra.mxu0 %v253
    %690 = vmatpush.msra.mxu0 %v251
    %691 = vmatpush.msra.mxu0 %v249
    %692 = vmatpush.msra.mxu0 %v247
    %693 = vmatpush.msra.mxu0 %v245
    %694 = vmatpush.msra.mxu0 %v243
    %695 = vmatpush.msra.mxu0 %v241
    %696 = vmatpush.msra.mxu0 %v239
    %697 = vmatpush.msra.mxu0 %v237
    %698 = vmatpush.msra.mxu0 %v235
    %699 = vmatpush.msra.mxu0 %v233
    %700 = vmatpush.msra.mxu0 %v231
    %701 = vmatmul.f32.gmra.mxu0 %v509
    %v702 = vpop.f32.mrf.mxu0
    %v703 = vadd.f32 %v489, %v702
    %704 = vdwg.mxu0
    %705 = vmatpush.msra.mxu0 %v293
    %706 = vmatpush.msra.mxu0 %v291
    %707 = vmatpush.msra.mxu0 %v289
    %708 = vmatpush.msra.mxu0 %v287
    %709 = vmatpush.msra.mxu0 %v285
    %710 = vmatpush.msra.mxu0 %v283
    %711 = vmatpush.msra.mxu0 %v281
    %712 = vmatpush.msra.mxu0 %v279
    %713 = vmatpush.msra.mxu0 %v277
    %714 = vmatpush.msra.mxu0 %v275
    %715 = vmatpush.msra.mxu0 %v273
    %716 = vmatpush.msra.mxu0 %v271
    %717 = vmatpush.msra.mxu0 %v269
    %718 = vmatpush.msra.mxu0 %v267
    %719 = vmatpush.msra.mxu0 %v265
    %720 = vmatpush.msra.mxu0 %v263
    %721 = vmatmul.f32.gmra.mxu0 %v510
    %v722 = vpop.f32.mrf.mxu0
    %v723 = vadd.f32 %v703, %v722
    %724 = vdwg.mxu0
    %725 = vmatpush.msra.mxu0 %v325
    %726 = vmatpush.msra.mxu0 %v323
    %727 = vmatpush.msra.mxu0 %v321
    %728 = vmatpush.msra.mxu0 %v319
    %729 = vmatpush.msra.mxu0 %v317
    %730 = vmatpush.msra.mxu0 %v315
    %731 = vmatpush.msra.mxu0 %v313
    %732 = vmatpush.msra.mxu0 %v311
    %733 = vmatpush.msra.mxu0 %v309
    %734 = vmatpush.msra.mxu0 %v307
    %735 = vmatpush.msra.mxu0 %v305
    %736 = vmatpush.msra.mxu0 %v303
    %737 = vmatpush.msra.mxu0 %v301
    %738 = vmatpush.msra.mxu0 %v299
    %739 = vmatpush.msra.mxu0 %v297
    %740 = vmatpush.msra.mxu0 %v295
    %741 = vmatmul.f32.gmra.mxu0 %v511
    %v742 = vpop.f32.mrf.mxu0
    %v743 = vadd.f32 %v723, %v742
    %744 = vdwg.mxu0
    %745 = vmatpush.msra.mxu0 %v357
    %746 = vmatpush.msra.mxu0 %v355
    %747 = vmatpush.msra.mxu0 %v353
    %748 = vmatpush.msra.mxu0 %v351
    %749 = vmatpush.msra.mxu0 %v349
    %750 = vmatpush.msra.mxu0 %v347
    %751 = vmatpush.msra.mxu0 %v345
    %752 = vmatpush.msra.mxu0 %v343
    %753 = vmatpush.msra.mxu0 %v341
    %754 = vmatpush.msra.mxu0 %v339
    %755 = vmatpush.msra.mxu0 %v337
    %756 = vmatpush.msra.mxu0 %v335
    %757 = vmatpush.msra.mxu0 %v333
    %758 = vmatpush.msra.mxu0 %v331
    %759 = vmatpush.msra.mxu0 %v329
    %760 = vmatpush.msra.mxu0 %v327
    %761 = vmatmul.f32.gmra.mxu0 %v512
    %v762 = vpop.f32.mrf.mxu0
    %v763 = vadd.f32 %v743, %v762
    %764 = vdwg.mxu0
    %765 = vmatpush.msra.mxu0 %v389
    %766 = vmatpush.msra.mxu0 %v387
    %767 = vmatpush.msra.mxu0 %v385
    %768 = vmatpush.msra.mxu0 %v383
    %769 = vmatpush.msra.mxu0 %v381
    %770 = vmatpush.msra.mxu0 %v379
    %771 = vmatpush.msra.mxu0 %v377
    %772 = vmatpush.msra.mxu0 %v375
    %773 = vmatpush.msra.mxu0 %v373
    %774 = vmatpush.msra.mxu0 %v371
    %775 = vmatpush.msra.mxu0 %v369
    %776 = vmatpush.msra.mxu0 %v367
    %777 = vmatpush.msra.mxu0 %v365
    %778 = vmatpush.msra.mxu0 %v363
    %779 = vmatpush.msra.mxu0 %v361
    %780 = vmatpush.msra.mxu0 %v359
    %781 = vmatmul.f32.gmra.mxu0 %v513
    %v782 = vpop.f32.mrf.mxu0
    %v783 = vadd.f32 %v763, %v782
    %784 = vdwg.mxu0
    %785 = vmatpush.msra.mxu0 %v421
    %786 = vmatpush.msra.mxu0 %v419
    %787 = vmatpush.msra.mxu0 %v417
    %788 = vmatpush.msra.mxu0 %v415
    %789 = vmatpush.msra.mxu0 %v413
    %790 = vmatpush.msra.mxu0 %v411
    %791 = vmatpush.msra.mxu0 %v409
    %792 = vmatpush.msra.mxu0 %v407
    %793 = vmatpush.msra.mxu0 %v405
    %794 = vmatpush.msra.mxu0 %v403
    %795 = vmatpush.msra.mxu0 %v401
    %796 = vmatpush.msra.mxu0 %v399
    %797 = vmatpush.msra.mxu0 %v397
    %798 = vmatpush.msra.mxu0 %v395
    %799 = vmatpush.msra.mxu0 %v393
    %800 = vmatpush.msra.mxu0 %v391
    %801 = vmatmul.f32.gmra.mxu0 %v514
    %v802 = vpop.f32.mrf.mxu0
    %v803 = vadd.f32 %v783, %v802
    %804 = vdwg.mxu0
    %805 = vmatpush.msra.mxu0 %v453
    %806 = vmatpush.msra.mxu0 %v451
    %807 = vmatpush.msra.mxu0 %v449
    %808 = vmatpush.msra.mxu0 %v447
    %809 = vmatpush.msra.mxu0 %v445
    %810 = vmatpush.msra.mxu0 %v443
    %811 = vmatpush.msra.mxu0 %v441
    %812 = vmatpush.msra.mxu0 %v439
    %813 = vmatpush.msra.mxu0 %v437
    %814 = vmatpush.msra.mxu0 %v435
    %815 = vmatpush.msra.mxu0 %v433
    %816 = vmatpush.msra.mxu0 %v431
    %817 = vmatpush.msra.mxu0 %v429
    %818 = vmatpush.msra.mxu0 %v427
    %819 = vmatpush.msra.mxu0 %v425
    %820 = vmatpush.msra.mxu0 %v423
    %821 = vmatmul.f32.gmra.mxu0 %v515
    %v822 = vpop.f32.mrf.mxu0
    %v823 = vadd.f32 %v803, %v822
    %824 = vdwg.mxu0
    %825 = vmatpush.msra.mxu0 %v485
    %826 = vmatpush.msra.mxu0 %v483
    %827 = vmatpush.msra.mxu0 %v481
    %828 = vmatpush.msra.mxu0 %v479
    %829 = vmatpush.msra.mxu0 %v477
    %830 = vmatpush.msra.mxu0 %v475
    %831 = vmatpush.msra.mxu0 %v473
    %832 = vmatpush.msra.mxu0 %v471
    %833 = vmatpush.msra.mxu0 %v469
    %834 = vmatpush.msra.mxu0 %v467
    %835 = vmatpush.msra.mxu0 %v465
    %836 = vmatpush.msra.mxu0 %v463
    %837 = vmatpush.msra.mxu0 %v461
    %838 = vmatpush.msra.mxu0 %v459
    %839 = vmatpush.msra.mxu0 %v457
    %840 = vmatpush.msra.mxu0 %v455
    %841 = vmatmul.f32.gmra.mxu0 %v516
    %v842 = vpop.f32.mrf.mxu0
    %v843 = vadd.f32 %v823, %v842
    %844 = vdwg.mxu0
    %v845 = vmax.f32 %v683, 0.0
    %v846 = vmax.f32 %v843, 0.0
    %v847 = vld [vmem:[%s3] sm:$0x3]
    %v849 = vperm.slane %v847, 0
    %v850 = vperm.slane %v847, 1
    %v853 = vmul.f32 %v845, %v849
    %v854 = vmul.f32 %v846, %v850
    %vm855 = vcmask 1041408
    %v856 = vsel %vm855, %v853, 0.0
    %v857 = vsel %vm855, %v854, 0.0
    %v858 = vadd.f32 %v856, %v857
    %859 = vadd.xlane.f32.xlu0 %v858
    %v860 = vpop.xlane.xlu0 %859
    %v861 = vld [vmem:[#allocation2] sm:$0x1]
    %v863 = vperm.slane %v861, 0
    %v865 = vadd.f32 %v860, %v863
    %867 = vset.pattern.permute.xlu0 0
    %868 = vperm.xlu0 %867, %v865
    %v869 = vpop.permute.xlu0 %868
    %871 = vst [vmem:[%s5] sm:$0x3] %v869
    // Predicated region
    $region30: #{deep_normal_head.1} parent=1 // pred_check
      _
    $region31: #{deep_normal_head.1} parent=1 // pred_check_branch
      %873 = sbr.rel (0) target = $region33
    $region32: #{deep_normal_head.1} parent=1 // pred_region
      _
    $region33: #{deep_normal_head.1} parent=1 // pred_fallthru
      _
    // Predicated region
    $region34: #{deep_normal_head.1} parent=1 // pred_check
      _
    $region35: #{deep_normal_head.1} parent=1 // pred_check_branch
      %875 = sbr.rel (0) target = $region37
    $region36: #{deep_normal_head.1} parent=1 // pred_region
      _
    $region37: #{deep_normal_head.1} parent=1 // pred_fallthru
      _
    %876 = vsyncpa [#allocation4], 1
    %877 = vsyncpa [#allocation6], 1

</llo_original>
